<compile_context>
chip_gen: v6e
topology: v6e:2x2x1
jax: 0.10.0
libtpu: 0.0.40
codegen_flags: <defaults>
</compile_context>

<pallas_src>
import jax
import jax.numpy as jnp
import numpy as np
from jax import lax
from jax.experimental import pallas as pl
from jax.experimental.pallas import tpu as pltpu

HIDDEN = 32
FEATURES = 4
EPS = 1e-5

# BN index convention inside the stacked (9, H) scale/shift tables:
# 0=bn1  1=bn12(shared)  2=bn2  3=bn1_attn  4=bn12_attn  5=bn2_attn
# 6=bn3  7=bn4  8=bn5


def make_kernel(act_dtype):
    """Kernel closure; act_dtype is the elementwise/activation dtype (bf16 on v6e/v7x)."""

    def kernel(u_ref, mask_ref, w1_ref, wbig_ref, whead_ref, misc_ref, out_ref):
        TB, N, F = u_ref.shape          # one batch tile = TB batches x N nodes
        H2 = w1_ref.shape[1]            # 2H (main | attn lane-concat)
        H = H2 // 2
        R = TB * N

        def mm(a, w):
            # bf16 MXU operands, f32 accumulation (weights are stored bf16).
            return jnp.dot(a.astype(jnp.bfloat16), w, preferred_element_type=jnp.float32)

        # ---- packed small parameters: one (8, 2H) operand, sliced statically ----
        misc = misc_ref[...]
        b1, b12, b3 = misc[0:1, :], misc[1:2, :], misc[2:3, :]
        bp1, bp2, bp3 = misc[3:4, :H], misc[4:5, :H], misc[5:6, :H]
        wreg, breg = misc[6:7, :H], misc[7:8, 0:1]

        u = u_ref[...].reshape(R, F)                               # (R, F) f32

        # ---- fused main|attn per-node MLPs (dropout = identity, BN folded into W/b) ----
        c1 = (mm(u, w1_ref[...]) + b1).astype(act_dtype)           # [bn1(lin1) | bn1_attn(lin1_attn)]
        c2 = jnp.tanh((mm(jnp.tanh(c1), wbig_ref[0]) + b12).astype(act_dtype))  # bn12 | bn12_attn
        c = c1 + c2                                                # residual, both halves (R, 2H)
        y3 = (mm(c, wbig_ref[1]) + b3).astype(act_dtype)           # [bn2(lin2(c_m)) | lin2_attn(bn2_attn(c_a))]

        x_main = (c[:, :H] + jnp.tanh(y3[:, :H])).reshape(TB, N, H)  # main-branch node features
        logits = y3[:, H:].reshape(TB, N, H)                         # attention logits

        # ---- masked softmax over nodes + per-batch aggregation (no seg matmul) ----
        # masked_fill(mask==0, -inf) + softmax  ==  exp(logit - max) * keep, normalized.
        # Per-batch max (not global) avoids cross-batch underflow; max is taken over all
        # nodes (masked included) which is safe since exp(. - max) <= 1. All-masked
        # batches would produce Inf/NaN exactly like the PyTorch module.
        keep = jnp.where(mask_ref[...] == 0.0, 0.0, 1.0).astype(act_dtype)   # (TB, N, 1)
        m = jnp.max(logits, axis=1, keepdims=True)                           # (TB, 1, H)
        e = jnp.exp(logits - m) * keep                                       # (TB, N, H)
        num = jnp.sum((x_main * e).astype(jnp.float32), axis=1)              # (TB, H) f32
        den = jnp.sum(e.astype(jnp.float32), axis=1)                         # (TB, H) f32
        x = num * pl.reciprocal(den, approx=True)                            # (TB, H) f32

        # ---- post-aggregation head (bn3 / shared bn12 / bn4 folded into the linears) ----
        x = x + jnp.tanh(mm(x, whead_ref[0]) + bp1)
        x = x + jnp.tanh(mm(x, whead_ref[1]) + bp2)
        x = x + jnp.tanh(mm(x, whead_ref[2]) + bp3)

        # ---- bn5 + linear2_regression folded; lane-dense (1, TB) result ----
        # contract over H on both sides -> batch lands on the lane axis directly.
        val = lax.dot_general(
            wreg.astype(jnp.bfloat16), x.astype(jnp.bfloat16),
            dimension_numbers=(((1,), (1,)), ((), ())),
            preferred_element_type=jnp.float32) + breg                        # (1, TB)
        out_ref[...] = val.reshape(1, 1, TB)

    return kernel


def fold_params(p):
    """Fold eval-mode BN affines into the linears, fuse main|attn branches, pack operands."""
    s, t = p["bn_scale"], p["bn_shift"]                   # (9, H)
    H = p["w1_main"].shape[1]
    H2 = 2 * H
    zeros = jnp.zeros((H, H), jnp.float32)

    def out_fold(w, i):          # y = x @ w, then bn_i  ->  x @ (w * s_i) + t_i
        return w * s[i][None, :], t[i]

    # Stage 1: lane-concat of the two first linears -> (F, 2H).
    w1m, b1m = out_fold(p["w1_main"], 0)
    w1a, b1a = out_fold(p["w1_attn"], 3)
    w1 = jnp.concatenate([w1m, w1a], axis=1)
    b1 = jnp.concatenate([b1m, b1a])

    # Stage 2: block-diagonal second linears -> (2H, 2H).
    w12m, b12m = out_fold(p["w12_main"], 1)               # shared bn12
    w12a, b12a = out_fold(p["w12_attn"], 4)
    w12 = jnp.block([[w12m, zeros], [zeros, w12a]])
    b12 = jnp.concatenate([b12m, b12a])

    # Stage 3: main = linear2 then bn2 (output fold); attn = bn2_attn then linear2_attn (input fold).
    w3m, b3m = out_fold(p["w2_main"], 2)
    w3a = s[5][:, None] * p["w2_attn"]
    b3a = t[5] @ p["w2_attn"]
    w3 = jnp.block([[w3m, zeros], [zeros, w3a]])
    b3 = jnp.concatenate([b3m, b3a])

    # Post-aggregation head.
    wp1, bp1 = out_fold(p["w1_after"], 6)                 # bn3
    wp2, bp2 = out_fold(p["w12_after"], 1)                # shared bn12 again
    wp3, bp3 = out_fold(p["w2_after"], 7)                 # bn4

    # bn5 then regression: (x*s8 + t8) @ w_reg + b_reg.
    w_reg_row = s[8] * p["w_reg"][:, 0]                   # (H,)
    b_reg = (t[8] @ p["w_reg"] + p["b_reg"][0])[0]        # scalar

    # Pack all the tiny rows into one (8, 2H) f32 operand (one VMEM tile, one DMA).
    misc = jnp.zeros((8, H2), jnp.float32)
    misc = misc.at[0].set(b1).at[1].set(b12).at[2].set(b3)
    misc = misc.at[3, :H].set(bp1).at[4, :H].set(bp2).at[5, :H].set(bp3)
    misc = misc.at[6, :H].set(w_reg_row).at[7, 0].set(b_reg)

    bf = lambda a: a.astype(jnp.bfloat16)
    return dict(
        w1=bf(w1),                                   # (F, 2H)   bf16
        wbig=bf(jnp.stack([w12, w3])),               # (2, 2H, 2H) bf16
        whead=bf(jnp.stack([wp1, wp2, wp3])),        # (3, H, H) bf16
        misc=misc,                                   # (8, 2H)   f32
    )


def spatial_regressor3(u, mask, params, *, batch_tile=None, elementwise_dtype=None):
    B, N, F = u.shape
    H = params["w1_main"].shape[1]
    H2 = 2 * H
    fp = fold_params(params)

    # bf16 elementwise only where the VPU/EUP have a bf16 path (v6e / v7x); f32 otherwise.
    if elementwise_dtype is None:
        kind = jax.devices()[0].device_kind.lower()
        elementwise_dtype = jnp.bfloat16 if ("v6" in kind or "v7" in kind) else jnp.float32

    # Batch tile: target ~1024 node rows per grid step so the per-step overhead amortizes.
    if batch_tile is None:
        batch_tile = max(1, 1024 // N)
    TB = max(1, min(batch_tile, B))
    G = -(-B // TB)
    Bp = G * TB

    if Bp != B:
        pad = Bp - B
        u = jnp.concatenate([u, jnp.zeros((pad, N, F), u.dtype)], axis=0)
        # Padded batches get an all-ones mask so their (discarded) softmax stays finite.
        mask = jnp.concatenate([mask, jnp.ones((pad, N, 1), mask.dtype)], axis=0)

    R = Bp * N
    flops = int(2 * R * (F * H2 + 2 * H2 * H2) + 2 * Bp * (3 * H * H + H))
    transcendentals = int(R * (2 * H2 + 2 * H) + Bp * (3 * H + H))
    bytes_accessed = int(u.size * 4 + mask.size * 4 + fp["w1"].size * 2
                         + fp["wbig"].size * 2 + fp["whead"].size * 2
                         + fp["misc"].size * 4 + Bp * 4)

    fn = pl.pallas_call(
        make_kernel(elementwise_dtype),
        grid=(G,),
        in_specs=[
            pl.BlockSpec((TB, N, F), lambda b: (b, 0, 0)),          # u tile
            pl.BlockSpec((TB, N, 1), lambda b: (b, 0, 0)),          # mask tile
            pl.BlockSpec(fp["w1"].shape, lambda b: (0, 0)),         # weights: resident across steps
            pl.BlockSpec(fp["wbig"].shape, lambda b: (0, 0, 0)),
            pl.BlockSpec(fp["whead"].shape, lambda b: (0, 0, 0)),
            pl.BlockSpec(fp["misc"].shape, lambda b: (0, 0)),
        ],
        out_specs=pl.BlockSpec((1, 1, TB), lambda b: (b, 0, 0)),    # lane-dense (batch on lanes)
        out_shape=jax.ShapeDtypeStruct((G, 1, TB), jnp.float32),
        compiler_params=pltpu.CompilerParams(
            dimension_semantics=("parallel",),                      # 2nd TC on v7x
            vmem_limit_bytes=32 * 1024 * 1024),
        cost_estimate=pl.CostEstimate(flops=flops,
                                      transcendentals=transcendentals,
                                      bytes_accessed=bytes_accessed),
    )
    out = fn(u, mask, fp["w1"], fp["wbig"], fp["whead"], fp["misc"])
    return out.reshape(Bp, 1)[:B]


def init_params(key, hidden=HIDDEN, features=FEATURES):
    """Deterministic synthetic parameters (weights stored pre-transposed as (in, out))."""
    keys = jax.random.split(key, 16)

    def w(k, shape, s=0.3):
        return (s * jax.random.normal(k, shape)).astype(jnp.float32)

    # 9 distinct BatchNorm1d modules actually registered (bn12 is shared).
    kg, kb, km, kv = jax.random.split(keys[15], 4)
    gamma = (1.0 + 0.1 * jax.random.normal(kg, (9, hidden))).astype(jnp.float32)
    beta = (0.1 * jax.random.normal(kb, (9, hidden))).astype(jnp.float32)
    rmean = (0.1 * jax.random.normal(km, (9, hidden))).astype(jnp.float32)
    rvar = (1.0 + 0.2 * jax.random.uniform(kv, (9, hidden))).astype(jnp.float32)
    bn_scale = gamma / jnp.sqrt(rvar + EPS)
    bn_shift = beta - rmean * bn_scale

    return {
        "w1_main": w(keys[0], (features, hidden)),
        "w12_main": w(keys[1], (hidden, hidden)),
        "w2_main": w(keys[2], (hidden, hidden)),
        "w1_attn": w(keys[3], (features, hidden)),
        "w12_attn": w(keys[4], (hidden, hidden)),
        "w2_attn": w(keys[5], (hidden, hidden)),
        "w1_after": w(keys[6], (hidden, hidden)),
        "w12_after": w(keys[7], (hidden, hidden)),
        "w2_after": w(keys[8], (hidden, hidden)),
        "w_reg": w(keys[9], (hidden, 1)),
        "b_reg": w(keys[10], (1, 1), s=0.1),
        "bn_scale": bn_scale,
        "bn_shift": bn_shift,
    }


def reference_forward(u, mask, p):
    """Pure-JAX f32 mirror of the PyTorch eval-mode forward (for verification)."""
    B, N, F = u.shape
    H = p["w1_main"].shape[1]
    x = u.reshape(-1, F)

    def bn(v, i):
        return v * p["bn_scale"][i] + p["bn_shift"][i]

    x1 = bn(x @ p["w1_main"], 0)
    x2 = jnp.tanh(bn(jnp.tanh(x1) @ p["w12_main"], 1))
    xm = x1 + x2
    x3 = jnp.tanh(bn(xm @ p["w2_main"], 2))
    x_main = (xm + x3).reshape(B, N, H)

    a1 = bn(x @ p["w1_attn"], 3)
    a2 = jnp.tanh(bn(jnp.tanh(a1) @ p["w12_attn"], 4))
    xa = a1 + a2
    xa = (bn(xa, 5) @ p["w2_attn"]).reshape(B, N, H)
    xa = jnp.where(mask == 0.0, -jnp.inf, xa)
    attn = jax.nn.softmax(xa, axis=1)

    xagg = jnp.sum(x_main * attn, axis=1)
    xagg = xagg + jnp.tanh(bn(xagg @ p["w1_after"], 6))
    xagg = xagg + jnp.tanh(bn(xagg @ p["w12_after"], 1))
    xagg = xagg + jnp.tanh(bn(xagg @ p["w2_after"], 7))
    xagg = bn(xagg, 8)
    return xagg @ p["w_reg"] + p["b_reg"]


if __name__ == "__main__":
    B, N = 2, 16
    key = jax.random.PRNGKey(0)
    ku, km, kp = jax.random.split(key, 3)

    u = jax.random.normal(ku, (B, N, FEATURES), dtype=jnp.float32)
    mask = jax.random.bernoulli(km, 0.7, (B, N, 1)).astype(jnp.float32)
    mask = mask.at[:, 0, 0].set(1.0)  # ensure at least one unmasked node per batch

    params = init_params(kp)

    # batch_tile=1 at this demo size so the 1-D parallel grid actually takes 2 steps.
    out = spatial_regressor3(u, mask, params, batch_tile=1)
    out = jax.block_until_ready(out)

    ref = jax.block_until_ready(reference_forward(u, mask, params))
    assert out.shape == (B, 1)
    # Kernel uses bf16 MXU operands (and bf16 elementwise on v6e/v7x) + approx reciprocal;
    # reference is pure f32 — compare with a bf16-appropriate tolerance.
    np.testing.assert_allclose(np.asarray(out), np.asarray(ref), rtol=3e-2, atol=5e-2)

    print("KERNEL_OK")
</pallas_src>

<mosaic_0001>
module attributes {stable_mosaic.version = 11 : i64} {
  func.func @kernel(%arg0: i32, %arg1: memref<1x16x4xf32, #tpu.memory_space<vmem>>, %arg2: memref<1x16x1xf32, #tpu.memory_space<vmem>>, %arg3: memref<4x64xbf16, #tpu.memory_space<vmem>>, %arg4: memref<2x64x64xbf16, #tpu.memory_space<vmem>>, %arg5: memref<3x32x32xbf16, #tpu.memory_space<vmem>>, %arg6: memref<8x64xf32, #tpu.memory_space<vmem>>, %arg7: memref<1x1x1xf32, #tpu.memory_space<vmem>>) attributes {dimension_semantics = [#tpu.dimension_semantics<parallel>], iteration_bounds = array<i64: 2>, scalar_prefetch = 0 : i64, scratch_operands = 0 : i64, tpu.core_type = #tpu.core_type<tc>, window_params = [{transform_indices = @transform_0, window_bounds = array<i64: 1, 16, 4>}, {transform_indices = @transform_1, window_bounds = array<i64: 1, 16, 1>}, {pipeline_mode = #tpu.pipeline_mode<synchronous>, transform_indices = @transform_2, window_bounds = array<i64: 4, 64>}, {pipeline_mode = #tpu.pipeline_mode<synchronous>, transform_indices = @transform_3, window_bounds = array<i64: 2, 64, 64>}, {pipeline_mode = #tpu.pipeline_mode<synchronous>, transform_indices = @transform_4, window_bounds = array<i64: 3, 32, 32>}, {pipeline_mode = #tpu.pipeline_mode<synchronous>, transform_indices = @transform_5, window_bounds = array<i64: 8, 64>}, {transform_indices = @transform_6, window_bounds = array<i64: 1, 1, 1>}]} {
    %c0 = arith.constant 0 : index
    %c0_0 = arith.constant 0 : index
    %0 = vector.load %arg6[%c0, %c0_0] : memref<8x64xf32, #tpu.memory_space<vmem>>, vector<8x64xf32>
    %1 = vector.extract_strided_slice %0 {offsets = [0, 0], sizes = [1, 64], strides = [1, 1]} : vector<8x64xf32> to vector<1x64xf32>
    %2 = vector.extract_strided_slice %0 {offsets = [1, 0], sizes = [1, 64], strides = [1, 1]} : vector<8x64xf32> to vector<1x64xf32>
    %3 = vector.extract_strided_slice %0 {offsets = [2, 0], sizes = [1, 64], strides = [1, 1]} : vector<8x64xf32> to vector<1x64xf32>
    %4 = vector.extract_strided_slice %0 {offsets = [3, 0], sizes = [1, 32], strides = [1, 1]} : vector<8x64xf32> to vector<1x32xf32>
    %5 = vector.extract_strided_slice %0 {offsets = [4, 0], sizes = [1, 32], strides = [1, 1]} : vector<8x64xf32> to vector<1x32xf32>
    %6 = vector.extract_strided_slice %0 {offsets = [5, 0], sizes = [1, 32], strides = [1, 1]} : vector<8x64xf32> to vector<1x32xf32>
    %7 = vector.extract_strided_slice %0 {offsets = [6, 0], sizes = [1, 32], strides = [1, 1]} : vector<8x64xf32> to vector<1x32xf32>
    %8 = vector.extract_strided_slice %0 {offsets = [7, 0], sizes = [1, 1], strides = [1, 1]} : vector<8x64xf32> to vector<1x1xf32>
    %c0_1 = arith.constant 0 : index
    %c0_2 = arith.constant 0 : index
    %c0_3 = arith.constant 0 : index
    %9 = vector.load %arg1[%c0_1, %c0_2, %c0_3] : memref<1x16x4xf32, #tpu.memory_space<vmem>>, vector<1x16x4xf32>
    %10 = vector.shape_cast %9 : vector<1x16x4xf32> to vector<16x4xf32>
    %c0_4 = arith.constant 0 : index
    %c0_5 = arith.constant 0 : index
    %11 = vector.load %arg3[%c0_4, %c0_5] : memref<4x64xbf16, #tpu.memory_space<vmem>>, vector<4x64xbf16>
    %12 = arith.truncf %10 : vector<16x4xf32> to vector<16x4xbf16>
    %cst = arith.constant dense<0.000000e+00> : vector<16x64xf32>
    %13 = tpu.matmul %12, %11, %cst {dimension_numbers = #tpu.dot_dimension_numbers<[1], [0], [0], [1], [0, 0, 1, 1], [], []>} : vector<16x4xbf16>, vector<4x64xbf16>, vector<16x64xf32> -> vector<16x64xf32>
    %14 = vector.broadcast %1 : vector<1x64xf32> to vector<16x64xf32>
    %15 = arith.addf %13, %14 : vector<16x64xf32>
    %16 = math.tanh %15 : vector<16x64xf32>
    %c0_6 = arith.constant 0 : index
    %c0_7 = arith.constant 0 : index
    %c0_8 = arith.constant 0 : index
    %17 = vector.load %arg4[%c0_6, %c0_7, %c0_8] : memref<2x64x64xbf16, #tpu.memory_space<vmem>>, vector<1x64x64xbf16>
    %18 = vector.shape_cast %17 : vector<1x64x64xbf16> to vector<64x64xbf16>
    %19 = arith.truncf %16 : vector<16x64xf32> to vector<16x64xbf16>
    %cst_9 = arith.constant dense<0.000000e+00> : vector<16x64xf32>
    %20 = tpu.matmul %19, %18, %cst_9 {dimension_numbers = #tpu.dot_dimension_numbers<[1], [0], [0], [1], [0, 0, 1, 1], [], []>} : vector<16x64xbf16>, vector<64x64xbf16>, vector<16x64xf32> -> vector<16x64xf32>
    %21 = vector.broadcast %2 : vector<1x64xf32> to vector<16x64xf32>
    %22 = arith.addf %20, %21 : vector<16x64xf32>
    %23 = math.tanh %22 : vector<16x64xf32>
    %24 = arith.addf %15, %23 : vector<16x64xf32>
    %c1 = arith.constant 1 : index
    %c0_10 = arith.constant 0 : index
    %c0_11 = arith.constant 0 : index
    %25 = vector.load %arg4[%c1, %c0_10, %c0_11] : memref<2x64x64xbf16, #tpu.memory_space<vmem>>, vector<1x64x64xbf16>
    %26 = vector.shape_cast %25 : vector<1x64x64xbf16> to vector<64x64xbf16>
    %27 = arith.truncf %24 : vector<16x64xf32> to vector<16x64xbf16>
    %cst_12 = arith.constant dense<0.000000e+00> : vector<16x64xf32>
    %28 = tpu.matmul %27, %26, %cst_12 {dimension_numbers = #tpu.dot_dimension_numbers<[1], [0], [0], [1], [0, 0, 1, 1], [], []>} : vector<16x64xbf16>, vector<64x64xbf16>, vector<16x64xf32> -> vector<16x64xf32>
    %29 = vector.broadcast %3 : vector<1x64xf32> to vector<16x64xf32>
    %30 = arith.addf %28, %29 : vector<16x64xf32>
    %31 = vector.extract_strided_slice %24 {offsets = [0, 0], sizes = [16, 32], strides = [1, 1]} : vector<16x64xf32> to vector<16x32xf32>
    %32 = vector.extract_strided_slice %30 {offsets = [0, 0], sizes = [16, 32], strides = [1, 1]} : vector<16x64xf32> to vector<16x32xf32>
    %33 = math.tanh %32 : vector<16x32xf32>
    %34 = arith.addf %31, %33 : vector<16x32xf32>
    %35 = vector.shape_cast %34 : vector<16x32xf32> to vector<1x16x32xf32>
    %36 = vector.extract_strided_slice %30 {offsets = [0, 32], sizes = [16, 32], strides = [1, 1]} : vector<16x64xf32> to vector<16x32xf32>
    %37 = vector.shape_cast %36 : vector<16x32xf32> to vector<1x16x32xf32>
    %c0_13 = arith.constant 0 : index
    %c0_14 = arith.constant 0 : index
    %c0_15 = arith.constant 0 : index
    %38 = vector.load %arg2[%c0_13, %c0_14, %c0_15] : memref<1x16x1xf32, #tpu.memory_space<vmem>>, vector<1x16x1xf32>
    %cst_16 = arith.constant 0.000000e+00 : f32
    %39 = vector.broadcast %cst_16 : f32 to vector<1x16x1xf32>
    %40 = arith.cmpf oeq, %38, %39 : vector<1x16x1xf32>
    %cst_17 = arith.constant 0.000000e+00 : f32
    %cst_18 = arith.constant 1.000000e+00 : f32
    %41 = vector.broadcast %cst_17 : f32 to vector<1x16x1xf32>
    %42 = vector.broadcast %cst_18 : f32 to vector<1x16x1xf32>
    %43 = arith.select %40, %41, %42 : vector<1x16x1xi1>, vector<1x16x1xf32>
    %cst_19 = arith.constant dense<0xFF800000> : vector<1x32xf32>
    %44 = vector.multi_reduction <maximumf>, %37, %cst_19 [1] : vector<1x16x32xf32> to vector<1x32xf32>
    %45 = vector.shape_cast %44 : vector<1x32xf32> to vector<1x1x32xf32>
    %46 = vector.broadcast %45 : vector<1x1x32xf32> to vector<1x16x32xf32>
    %47 = arith.subf %37, %46 : vector<1x16x32xf32>
    %48 = math.exp %47 : vector<1x16x32xf32>
    %49 = vector.broadcast %43 : vector<1x16x1xf32> to vector<1x16x32xf32>
    %50 = arith.mulf %48, %49 : vector<1x16x32xf32>
    %51 = arith.mulf %35, %50 : vector<1x16x32xf32>
    %cst_20 = arith.constant dense<0.000000e+00> : vector<1x32xf32>
    %52 = vector.multi_reduction <add>, %51, %cst_20 [1] : vector<1x16x32xf32> to vector<1x32xf32>
    %cst_21 = arith.constant dense<0.000000e+00> : vector<1x32xf32>
    %53 = vector.multi_reduction <add>, %50, %cst_21 [1] : vector<1x16x32xf32> to vector<1x32xf32>
    %54 = tpu.reciprocal %53 {approx = true} : vector<1x32xf32> -> vector<1x32xf32>
    %55 = arith.mulf %52, %54 : vector<1x32xf32>
    %c0_22 = arith.constant 0 : index
    %c0_23 = arith.constant 0 : index
    %c0_24 = arith.constant 0 : index
    %56 = vector.load %arg5[%c0_22, %c0_23, %c0_24] : memref<3x32x32xbf16, #tpu.memory_space<vmem>>, vector<1x32x32xbf16>
    %57 = vector.shape_cast %56 : vector<1x32x32xbf16> to vector<32x32xbf16>
    %58 = arith.truncf %55 : vector<1x32xf32> to vector<1x32xbf16>
    %cst_25 = arith.constant dense<0.000000e+00> : vector<1x32xf32>
    %59 = tpu.matmul %58, %57, %cst_25 {dimension_numbers = #tpu.dot_dimension_numbers<[1], [0], [0], [1], [0, 0, 1, 1], [], []>} : vector<1x32xbf16>, vector<32x32xbf16>, vector<1x32xf32> -> vector<1x32xf32>
    %60 = arith.addf %59, %4 : vector<1x32xf32>
    %61 = math.tanh %60 : vector<1x32xf32>
    %62 = arith.addf %55, %61 : vector<1x32xf32>
    %c1_26 = arith.constant 1 : index
    %c0_27 = arith.constant 0 : index
    %c0_28 = arith.constant 0 : index
    %63 = vector.load %arg5[%c1_26, %c0_27, %c0_28] : memref<3x32x32xbf16, #tpu.memory_space<vmem>>, vector<1x32x32xbf16>
    %64 = vector.shape_cast %63 : vector<1x32x32xbf16> to vector<32x32xbf16>
    %65 = arith.truncf %62 : vector<1x32xf32> to vector<1x32xbf16>
    %cst_29 = arith.constant dense<0.000000e+00> : vector<1x32xf32>
    %66 = tpu.matmul %65, %64, %cst_29 {dimension_numbers = #tpu.dot_dimension_numbers<[1], [0], [0], [1], [0, 0, 1, 1], [], []>} : vector<1x32xbf16>, vector<32x32xbf16>, vector<1x32xf32> -> vector<1x32xf32>
    %67 = arith.addf %66, %5 : vector<1x32xf32>
    %68 = math.tanh %67 : vector<1x32xf32>
    %69 = arith.addf %62, %68 : vector<1x32xf32>
    %c2 = arith.constant 2 : index
    %c0_30 = arith.constant 0 : index
    %c0_31 = arith.constant 0 : index
    %70 = vector.load %arg5[%c2, %c0_30, %c0_31] : memref<3x32x32xbf16, #tpu.memory_space<vmem>>, vector<1x32x32xbf16>
    %71 = vector.shape_cast %70 : vector<1x32x32xbf16> to vector<32x32xbf16>
    %72 = arith.truncf %69 : vector<1x32xf32> to vector<1x32xbf16>
    %cst_32 = arith.constant dense<0.000000e+00> : vector<1x32xf32>
    %73 = tpu.matmul %72, %71, %cst_32 {dimension_numbers = #tpu.dot_dimension_numbers<[1], [0], [0], [1], [0, 0, 1, 1], [], []>} : vector<1x32xbf16>, vector<32x32xbf16>, vector<1x32xf32> -> vector<1x32xf32>
    %74 = arith.addf %73, %6 : vector<1x32xf32>
    %75 = math.tanh %74 : vector<1x32xf32>
    %76 = arith.addf %69, %75 : vector<1x32xf32>
    %77 = arith.truncf %7 : vector<1x32xf32> to vector<1x32xbf16>
    %78 = arith.truncf %76 : vector<1x32xf32> to vector<1x32xbf16>
    %79 = arith.extf %77 : vector<1x32xbf16> to vector<1x32xf32>
    %80 = arith.extf %78 : vector<1x32xbf16> to vector<1x32xf32>
    %cst_33 = arith.constant dense<0.000000e+00> : vector<1xf32>
    %81 = arith.mulf %79, %80 : vector<1x32xf32>
    %82 = vector.multi_reduction <add>, %81, %cst_33 [1] : vector<1x32xf32> to vector<1xf32>
    %83 = vector.shape_cast %82 : vector<1xf32> to vector<1x1xf32>
    %84 = arith.addf %83, %8 : vector<1x1xf32>
    %85 = vector.shape_cast %84 : vector<1x1xf32> to vector<1x1x1xf32>
    %c0_34 = arith.constant 0 : index
    %c0_35 = arith.constant 0 : index
    %c0_36 = arith.constant 0 : index
    %86 = vector.load %arg7[%c0_34, %c0_35, %c0_36] : memref<1x1x1xf32, #tpu.memory_space<vmem>>, vector<1x1x1xf32>
    tpu.vector_store %arg7[%c0_34, %c0_35, %c0_36], %85 {strides = array<i32>} : memref<1x1x1xf32, #tpu.memory_space<vmem>>, vector<1x1x1xf32>,
    return
  }
  func.func @transform_0(%arg0: i32) -> (i32, i32, i32) {
    %c0_i32 = arith.constant 0 : i32
    %c0_i32_0 = arith.constant 0 : i32
    %c0_i32_1 = arith.constant 0 : i32
    return %arg0, %c0_i32, %c0_i32_0 : i32, i32, i32
  }
  func.func @transform_1(%arg0: i32) -> (i32, i32, i32) {
    %c0_i32 = arith.constant 0 : i32
    %c0_i32_0 = arith.constant 0 : i32
    %c0_i32_1 = arith.constant 0 : i32
    return %arg0, %c0_i32, %c0_i32_0 : i32, i32, i32
  }
  func.func @transform_2(%arg0: i32) -> (i32, i32) {
    %c0_i32 = arith.constant 0 : i32
    %c0_i32_0 = arith.constant 0 : i32
    %c0_i32_1 = arith.constant 0 : i32
    return %c0_i32, %c0_i32_0 : i32, i32
  }
  func.func @transform_3(%arg0: i32) -> (i32, i32, i32) {
    %c0_i32 = arith.constant 0 : i32
    %c0_i32_0 = arith.constant 0 : i32
    %c0_i32_1 = arith.constant 0 : i32
    %c0_i32_2 = arith.constant 0 : i32
    return %c0_i32, %c0_i32_0, %c0_i32_1 : i32, i32, i32
  }
  func.func @transform_4(%arg0: i32) -> (i32, i32, i32) {
    %c0_i32 = arith.constant 0 : i32
    %c0_i32_0 = arith.constant 0 : i32
    %c0_i32_1 = arith.constant 0 : i32
    %c0_i32_2 = arith.constant 0 : i32
    return %c0_i32, %c0_i32_0, %c0_i32_1 : i32, i32, i32
  }
  func.func @transform_5(%arg0: i32) -> (i32, i32) {
    %c0_i32 = arith.constant 0 : i32
    %c0_i32_0 = arith.constant 0 : i32
    %c0_i32_1 = arith.constant 0 : i32
    return %c0_i32, %c0_i32_0 : i32, i32
  }
  func.func @transform_6(%arg0: i32) -> (i32, i32, i32) {
    %c0_i32 = arith.constant 0 : i32
    %c0_i32_0 = arith.constant 0 : i32
    %c0_i32_1 = arith.constant 0 : i32
    return %arg0, %c0_i32, %c0_i32_0 : i32, i32, i32
  }
}

</mosaic_0001>

<llo_original>
// kernel: tpu_custom_call.1
$region0: #{tpu_custom_call.1}
  #allocation0 [shape = 'u32[]', space=smem, size = 0x4, offset = 0x4, fixed_abs, tag = 'smem constant byte address 0x4 - core index']
  #allocation1 [shape = 'u32[144,128]{1,0:T(1,128)}', space=vmem, size = 0x12000, scoped, tag = 'internal scratch']
  %s0 = inlined_call_operand.vmem [shape: f32[2,16,4], index: 0, kind: input, shape index: {}]
  %s1 = inlined_call_operand.vmem [shape: f32[2,16,1], index: 1, kind: input, shape index: {}]
  %s2 = inlined_call_operand.vmem [shape: bf16[4,64], index: 2, kind: input, shape index: {}]
  %s3 = inlined_call_operand.vmem [shape: bf16[2,64,64], index: 3, kind: input, shape index: {}]
  %s4 = inlined_call_operand.hbm [shape: bf16[3,32,32], index: 4, kind: input, shape index: {}]
  %s5 = inlined_call_operand.vmem [shape: f32[8,64], index: 5, kind: input, shape index: {}]
  %s6 = inlined_call_operand.vmem [shape: f32[2,1,1], index: 6, kind: output, shape index: {}]
  %s7 = sld [smem:[#allocation0]]
  $region61: #{tpu_custom_call.1} parent=0
    _
  %s9 = ssub.s32 1, %s7
  %s10 = scalar_select 0, %s9, %s7
  $region1: #{tpu_custom_call.1} parent=0
    #allocation2 [shape = 'u8[24576]{0}', space=vmem, size = 0x6000, scoped, tag = 'input window, operand 4, single buffered']
    #allocation3 [shape = 's32[2]{0}', space=sflag, size = 0x8, scoped, tag = 'scoped memory for tpu_custom_call.1']
    %11 = vsyncpa [#allocation3], 0
    loop: start=0, step=1, limit=4
    $region2: #{tpu_custom_call.1} parent=1 // loop_pre_header
      _
    $region3: #{tpu_custom_call.1} parent=1 // loop_header
      %s13 = sphi 0, %s17
      %p14 = scmp.ge.s32.totalorder %s13, 4
      %s23 = sphi 0, %s25
      %s26 = sphi 0, %s23
      %s27 = sphi 0, %s26
      %s43 = sphi 0, %s27
      %s49 = sphi 0, %s51
      %s52 = sphi 0, %s49
      %s53 = sphi 0, %s52
      %s69 = sphi 0, %s53
      %s73 = sphi 0, %s73
      %s75 = sphi 0, %s73
      %s76 = sphi 0, %s75
      %s90 = sphi 0, %s76
      %s94 = sphi 0, %s94
      %s96 = sphi 0, %s94
      %s97 = sphi 0, %s96
      %s111 = sphi 0, %s97
      %s115 = sphi 0, %s115
      %s117 = sphi 0, %s115
      %s118 = sphi 0, %s117
      %s132 = sphi 0, %s118
      %s136 = sphi 0, %s136
      %s138 = sphi 0, %s136
      %s139 = sphi 0, %s138
      %s153 = sphi 0, %s139
      %s159 = sphi 0, %s161
      %s162 = sphi 0, %s159
      %s163 = sphi 0, %s162
      %s179 = sphi 0, %s163
    $region4: #{tpu_custom_call.1} parent=1 // loop_header_branch
      %16 = sbr.rel (%p14) target = $region8
    $region5: #{tpu_custom_call.1} parent=1 // loop_body
      %s18 = ssub.s32 %s13, 1
      %s19 = ssub.s32 %s13, 2
      %s20 = sadd.s32 %s13, 1
      %s21 = ssub.s32 %s13, %s20
      %p22 = scmp.eq.s32.totalorder %s21, 0
      %s24 = sadd.s32 %s23, 1
      %s25 = scalar_select %p22, %s23, %s24
      %p28 = pneg %p22
      %p29 = scmp.eq.s32.totalorder %s13, 1
      %p30 = por %p28, %p29
      %p31 = scmp.ne.s32.totalorder %s23, %s26
      %p32 = scmp.eq.s32.totalorder %s13, 0
      %p33 = por %p31, %p32
      %p34 = scmp.ne.s32.totalorder %s23, %s26
      %p35 = scmp.eq.s32.totalorder %s18, 1
      %p36 = por %p34, %p35
      %p37 = scmp.ne.s32.totalorder %s26, %s27
      %p38 = scmp.eq.s32.totalorder %s18, 0
      %p39 = por %p37, %p38
      %p40 = scmp.ne.s32.totalorder %s26, %s27
      %p41 = scmp.eq.s32.totalorder %s19, 1
      %p42 = por %p40, %p41
      %p44 = scmp.ne.s32.totalorder %s27, %s43
      %p45 = scmp.eq.s32.totalorder %s19, 0
      %p46 = por %p44, %p45
      %s47 = ssub.s32 %s13, %s20
      %p48 = scmp.eq.s32.totalorder %s47, 0
      %s50 = sadd.s32 %s49, 1
      %s51 = scalar_select %p48, %s49, %s50
      %p54 = pneg %p48
      %p55 = scmp.eq.s32.totalorder %s13, 1
      %p56 = por %p54, %p55
      %p57 = scmp.ne.s32.totalorder %s49, %s52
      %p58 = scmp.eq.s32.totalorder %s13, 0
      %p59 = por %p57, %p58
      %p60 = scmp.ne.s32.totalorder %s49, %s52
      %p61 = scmp.eq.s32.totalorder %s18, 1
      %p62 = por %p60, %p61
      %p63 = scmp.ne.s32.totalorder %s52, %s53
      %p64 = scmp.eq.s32.totalorder %s18, 0
      %p65 = por %p63, %p64
      %p66 = scmp.ne.s32.totalorder %s52, %s53
      %p67 = scmp.eq.s32.totalorder %s19, 1
      %p68 = por %p66, %p67
      %p70 = scmp.ne.s32.totalorder %s53, %s69
      %p71 = scmp.eq.s32.totalorder %s19, 0
      %p72 = por %p70, %p71
      %s74 = sadd.s32 %s73, 1
      %p77 = scmp.eq.s32.totalorder %s13, 1
      %p78 = scmp.ne.s32.totalorder %s73, %s75
      %p79 = scmp.eq.s32.totalorder %s13, 0
      %p80 = por %p78, %p79
      %p81 = scmp.ne.s32.totalorder %s73, %s75
      %p82 = scmp.eq.s32.totalorder %s18, 1
      %p83 = por %p81, %p82
      %p84 = scmp.ne.s32.totalorder %s75, %s76
      %p85 = scmp.eq.s32.totalorder %s18, 0
      %p86 = por %p84, %p85
      %p87 = scmp.ne.s32.totalorder %s75, %s76
      %p88 = scmp.eq.s32.totalorder %s19, 1
      %p89 = por %p87, %p88
      %p91 = scmp.ne.s32.totalorder %s76, %s90
      %p92 = scmp.eq.s32.totalorder %s19, 0
      %p93 = por %p91, %p92
      %s95 = sadd.s32 %s94, 1
      %p98 = scmp.eq.s32.totalorder %s13, 1
      %p99 = scmp.ne.s32.totalorder %s94, %s96
      %p100 = scmp.eq.s32.totalorder %s13, 0
      %p101 = por %p99, %p100
      %p102 = scmp.ne.s32.totalorder %s94, %s96
      %p103 = scmp.eq.s32.totalorder %s18, 1
      %p104 = por %p102, %p103
      %p105 = scmp.ne.s32.totalorder %s96, %s97
      %p106 = scmp.eq.s32.totalorder %s18, 0
      %p107 = por %p105, %p106
      %p108 = scmp.ne.s32.totalorder %s96, %s97
      %p109 = scmp.eq.s32.totalorder %s19, 1
      %p110 = por %p108, %p109
      %p112 = scmp.ne.s32.totalorder %s97, %s111
      %p113 = scmp.eq.s32.totalorder %s19, 0
      %p114 = por %p112, %p113
      %s116 = sadd.s32 %s115, 1
      %p119 = scmp.eq.s32.totalorder %s13, 1
      %p120 = scmp.ne.s32.totalorder %s115, %s117
      %p121 = scmp.eq.s32.totalorder %s13, 0
      %p122 = por %p120, %p121
      %p123 = scmp.ne.s32.totalorder %s115, %s117
      %p124 = scmp.eq.s32.totalorder %s18, 1
      %p125 = por %p123, %p124
      %p126 = scmp.ne.s32.totalorder %s117, %s118
      %p127 = scmp.eq.s32.totalorder %s18, 0
      %p128 = por %p126, %p127
      %p129 = scmp.ne.s32.totalorder %s117, %s118
      %p130 = scmp.eq.s32.totalorder %s19, 1
      %p131 = por %p129, %p130
      %p133 = scmp.ne.s32.totalorder %s118, %s132
      %p134 = scmp.eq.s32.totalorder %s19, 0
      %p135 = por %p133, %p134
      %s137 = sadd.s32 %s136, 1
      %p140 = scmp.eq.s32.totalorder %s13, 1
      %p141 = scmp.ne.s32.totalorder %s136, %s138
      %p142 = scmp.eq.s32.totalorder %s13, 0
      %p143 = por %p141, %p142
      %p144 = scmp.ne.s32.totalorder %s136, %s138
      %p145 = scmp.eq.s32.totalorder %s18, 1
      %p146 = por %p144, %p145
      %p147 = scmp.ne.s32.totalorder %s138, %s139
      %p148 = scmp.eq.s32.totalorder %s18, 0
      %p149 = por %p147, %p148
      %p150 = scmp.ne.s32.totalorder %s138, %s139
      %p151 = scmp.eq.s32.totalorder %s19, 1
      %p152 = por %p150, %p151
      %p154 = scmp.ne.s32.totalorder %s139, %s153
      %p155 = scmp.eq.s32.totalorder %s19, 0
      %p156 = por %p154, %p155
      %s157 = ssub.s32 %s13, %s20
      %p158 = scmp.eq.s32.totalorder %s157, 0
      %s160 = sadd.s32 %s159, 1
      %s161 = scalar_select %p158, %s159, %s160
      %p164 = pneg %p158
      %p165 = scmp.eq.s32.totalorder %s13, 1
      %p166 = por %p164, %p165
      %p167 = scmp.ne.s32.totalorder %s159, %s162
      %p168 = scmp.eq.s32.totalorder %s13, 0
      %p169 = por %p167, %p168
      %p170 = scmp.ne.s32.totalorder %s159, %s162
      %p171 = scmp.eq.s32.totalorder %s18, 1
      %p172 = por %p170, %p171
      %p173 = scmp.ne.s32.totalorder %s162, %s163
      %p174 = scmp.eq.s32.totalorder %s18, 0
      %p175 = por %p173, %p174
      %p176 = scmp.ne.s32.totalorder %s162, %s163
      %p177 = scmp.eq.s32.totalorder %s19, 1
      %p178 = por %p176, %p177
      %p180 = scmp.ne.s32.totalorder %s163, %s179
      %p181 = scmp.eq.s32.totalorder %s19, 0
      %p182 = por %p180, %p181
      %p183 = scmp.le.s32.totalorder 1, %s13
      %p184 = scmp.lt.s32.totalorder %s13, 3
      %p185 = pnand %p183, %p184
      %p186 = pneg %p185
      // Predicated region
      $region9: #{tpu_custom_call.1} parent=5 // pred_check
        _
      $region10: #{tpu_custom_call.1} parent=5 // pred_check_branch
        %188 = sbr.rel (%p185) target = $region12
      $region11: #{tpu_custom_call.1} parent=5 // pred_region
        %s189 = ssub.s32 %s13, 1
        // Predicated region
        $region13: #{tpu_custom_call.1} parent=11 // pred_check
          %p190 = pneg %p86
        $region14: #{tpu_custom_call.1} parent=11 // pred_check_branch
          %192 = sbr.rel (%p190) target = $region16
        $region15: #{tpu_custom_call.1} parent=11 // pred_region
          _
        $region16: #{tpu_custom_call.1} parent=11 // pred_fallthru
          _
        // Predicated region
        $region17: #{tpu_custom_call.1} parent=11 // pred_check
          %p193 = pneg %p107
        $region18: #{tpu_custom_call.1} parent=11 // pred_check_branch
          %195 = sbr.rel (%p193) target = $region20
        $region19: #{tpu_custom_call.1} parent=11 // pred_region
          _
        $region20: #{tpu_custom_call.1} parent=11 // pred_fallthru
          _
        // Predicated region
        $region21: #{tpu_custom_call.1} parent=11 // pred_check
          %p196 = pneg %p128
        $region22: #{tpu_custom_call.1} parent=11 // pred_check_branch
          %198 = sbr.rel (%p196) target = $region24
        $region23: #{tpu_custom_call.1} parent=11 // pred_region
          %s200 = ssub.s32 768, 768
          %201 = vsyncadd [#allocation3], %s200
          %s202 = sshll.u32 [#allocation2], 4
          %s203 = int_to_ptr.vmem [resolvable:$true] %s202
          %208 = dma.hbm_to_vmem [thread:$0]  %s4, 768, %s203, [#allocation3], 64, 64, 4
        $region24: #{tpu_custom_call.1} parent=11 // pred_fallthru
          _
        // Predicated region
        $region25: #{tpu_custom_call.1} parent=11 // pred_check
          %p209 = pneg %p149
        $region26: #{tpu_custom_call.1} parent=11 // pred_check_branch
          %211 = sbr.rel (%p209) target = $region28
        $region27: #{tpu_custom_call.1} parent=11 // pred_region
          _
        $region28: #{tpu_custom_call.1} parent=11 // pred_fallthru
          _
      $region12: #{tpu_custom_call.1} parent=5 // pred_fallthru
        _
      %p212 = scmp.lt.s32.totalorder %s13, 2
      // Predicated region
      $region29: #{tpu_custom_call.1} parent=5 // pred_check
        %p213 = pneg %p212
      $region30: #{tpu_custom_call.1} parent=5 // pred_check_branch
        %215 = sbr.rel (%p213) target = $region32
      $region31: #{tpu_custom_call.1} parent=5 // pred_region
        // Predicated region
        $region33: #{tpu_custom_call.1} parent=31 // pred_check
          %p216 = pneg %p33
        $region34: #{tpu_custom_call.1} parent=31 // pred_check_branch
          %218 = sbr.rel (%p216) target = $region36
        $region35: #{tpu_custom_call.1} parent=31 // pred_region
          %p219 = scmp.lt.s32.totalorder %s13, 1
          %s220 = scalar_select %p219, %s13, 1
          %s221 = smul.addr %s220, 2
          %s222 = smul.addr %s221, 8
          %s223 = scalar_lea.vmem %s0, %s222
        $region36: #{tpu_custom_call.1} parent=31 // pred_fallthru
          _
        // Predicated region
        $region37: #{tpu_custom_call.1} parent=31 // pred_check
          %p224 = pneg %p59
        $region38: #{tpu_custom_call.1} parent=31 // pred_check_branch
          %226 = sbr.rel (%p224) target = $region40
        $region39: #{tpu_custom_call.1} parent=31 // pred_region
          %p227 = scmp.lt.s32.totalorder %s13, 1
          %s228 = scalar_select %p227, %s13, 1
          %s229 = smul.addr %s228, 2
          %s230 = smul.addr %s229, 8
          %s231 = scalar_lea.vmem %s1, %s230
        $region40: #{tpu_custom_call.1} parent=31 // pred_fallthru
          _
      $region32: #{tpu_custom_call.1} parent=5 // pred_fallthru
        _
      %p232 = scmp.le.s32.totalorder 1, %s13
      %p233 = scmp.lt.s32.totalorder %s13, 3
      %p234 = pnand %p232, %p233
      %p235 = pneg %p234
      // Predicated region
      $region41: #{tpu_custom_call.1} parent=5 // pred_check
        _
      $region42: #{tpu_custom_call.1} parent=5 // pred_check_branch
        %237 = sbr.rel (%p234) target = $region44
      $region43: #{tpu_custom_call.1} parent=5 // pred_region
        %s238 = ssub.s32 %s13, 1
        // Predicated region
        $region45: #{tpu_custom_call.1} parent=43 // pred_check
          %p239 = pneg %p128
        $region46: #{tpu_custom_call.1} parent=43 // pred_check_branch
          %241 = sbr.rel (%p239) target = $region48
        $region47: #{tpu_custom_call.1} parent=43 // pred_region
          %242 = dma.done [#allocation3], 768
        $region48: #{tpu_custom_call.1} parent=43 // pred_fallthru
          _
        %p243 = scmp.lt.s32.totalorder %s18, 1
        %s244 = scalar_select %p243, %s18, 1
        %s245 = smul.addr %s244, 2
        %s246 = smul.addr %s245, 8
        %s247 = scalar_lea.vmem %s0, %s246
        %p248 = pneg %p39
        %p249 = pneg %p36
        %p250 = scmp.lt.s32.totalorder %s18, 1
        %s251 = scalar_select %p250, %s18, 1
        %s252 = smul.addr %s251, 2
        %s253 = smul.addr %s252, 8
        %s254 = scalar_lea.vmem %s1, %s253
        %p255 = pneg %p65
        %p256 = pneg %p62
        %p257 = pneg %p86
        %p258 = pneg %p83
        %p259 = pneg %p107
        %p260 = pneg %p104
        %p261 = pneg %p128
        %p262 = pneg %p125
        %p263 = pneg %p149
        %p264 = pneg %p146
        %p265 = pneg %p175
        %p266 = pneg %p172
        %p267 = scmp.lt.s32.totalorder %s18, 1
        %s268 = scalar_select %p267, %s18, 1
        %s269 = scalar_lea.vmem %s6, %s268
        %p270 = scmp.lt.s32.totalorder %s18, 1
        %s271 = scalar_select %p270, %s18, 1
        %s272 = smul.addr %s271, 2
        %s273 = smul.addr %s272, 8
        %s274 = scalar_lea.vmem %s0, %s273
        %p275 = scmp.lt.s32.totalorder %s18, 1
        %s276 = scalar_select %p275, %s18, 1
        %s277 = smul.addr %s276, 2
        %s278 = smul.addr %s277, 8
        %s279 = scalar_lea.vmem %s1, %s278
        %p280 = scmp.lt.s32.totalorder %s18, 1
        %s281 = scalar_select %p280, %s18, 1
        %s282 = scalar_lea.vmem %s6, %s281
        %v284 = vld [vmem:[%s5] sm:$0xff]
        %v285 = vld [vmem:[%s274] sm:$0xff]
        %v286 = vld [vmem:[%s274 + $0x8] sm:$0xff]
        %v287 = vld [vmem:[%s2] sm:$0x3]
        %v288 = vpack.c.bf16 %v286, %v285
        %v289 = vlaneseq
        %v290 = vshrl.u32 %v289, 7
        %v291 = vsub.s32 0, %v290
        %v292 = vrot.slane %v284, %v291
        %vm293 = vcmask 31744
        %v295 = vsel %vm293, %v288, 0
        %vm297 = vcmask 1041408
        %v299 = vsel %vm297, %v287, 0
        %301 = vmatprep.subr.bf16.mxu0 0
        %302 = vmatpush1.bf16.msra.mxu0 0
        %303 = vmatprep.subr.bf16.mxu0 0
        %304 = vmatpush1.bf16.msra.mxu0 0
        %305 = vmatprep.subr.bf16.mxu0 0
        %306 = vmatpush1.bf16.msra.mxu0 0
        %307 = vmatprep.subr.bf16.mxu0 0
        %308 = vmatpush1.bf16.msra.mxu0 0
        %309 = vmatprep.subr.bf16.mxu0 0
        %310 = vmatpush1.bf16.msra.mxu0 0
        %311 = vmatprep.subr.bf16.mxu0 0
        %312 = vmatpush1.bf16.msra.mxu0 0
        %313 = vmatprep.subr.bf16.mxu0 0
        %314 = vmatpush1.bf16.msra.mxu0 0
        %315 = vmatprep.subr.bf16.mxu0 0
        %316 = vmatpush1.bf16.msra.mxu0 %v299
        %317 = vmatprep.subr.bf16.mxu0 0
        %318 = vmatpush2.bf16.msra.mxu0 0
        %319 = vmatprep.subr.bf16.mxu0 0
        %320 = vmatpush2.bf16.msra.mxu0 0
        %321 = vmatprep.subr.bf16.mxu0 0
        %322 = vmatpush2.bf16.msra.mxu0 0
        %323 = vmatprep.subr.bf16.mxu0 0
        %324 = vmatpush2.bf16.msra.mxu0 0
        %325 = vmatprep.subr.bf16.mxu0 0
        %326 = vmatpush2.bf16.msra.mxu0 0
        %327 = vmatprep.subr.bf16.mxu0 0
        %328 = vmatpush2.bf16.msra.mxu0 0
        %329 = vmatprep.subr.bf16.mxu0 0
        %330 = vmatpush2.bf16.msra.mxu0 0
        %331 = vmatprep.subr.bf16.mxu0 0
        %332 = vmatpush2.bf16.msra.mxu0 0
        %333 = vmatprep.mubr.bf16.mxu0 0
        %334 = vmatmul.mubr.bf16.gmra.mxu0 %v295
        %v335 = vpop.f32.mrf.mxu0
        %v336 = vadd.f32 %v292, %v335
        %v337 = vpop.f32.mrf.mxu0
        %v338 = vpop.f32.mrf.mxu0
        %v339 = vadd.f32 %v292, %v338
        %v340 = vpop.f32.mrf.mxu0
        %341 = vdwg.mxu0
        %v342 = vtanh.pop %v336
        %v343 = vtanh.pop %v339
        %v344 = vld [vmem:[%s3] sm:$0xf]
        %v345 = vld [vmem:[%s3 + $0x4] sm:$0xf]
        %v346 = vld [vmem:[%s3 + $0x8] sm:$0xf]
        %v347 = vld [vmem:[%s3 + $0xc] sm:$0xf]
        %v348 = vld [vmem:[%s3 + $0x10] sm:$0xf]
        %v349 = vld [vmem:[%s3 + $0x14] sm:$0xf]
        %v350 = vld [vmem:[%s3 + $0x18] sm:$0xf]
        %v351 = vld [vmem:[%s3 + $0x1c] sm:$0xf]
        %v352 = vpack.c.bf16 %v343, %v342
        %v353 = vlaneseq
        %v354 = vshrl.u32 %v353, 7
        %v355 = vsub.s32 1, %v354
        %v356 = vrot.slane %v284, %v355
        %v365 = vunpack.c.l.b16 %v344
        %v366 = vunpack.c.l.b16 %v345
        %v367 = vunpack.c.l.b16 %v346
        %v368 = vunpack.c.l.b16 %v347
        %v369 = vunpack.c.l.b16 %v348
        %v370 = vunpack.c.l.b16 %v349
        %v371 = vunpack.c.l.b16 %v350
        %v372 = vunpack.c.l.b16 %v351
        %v373 = vpack.c.b16 %v366, %v365
        %v374 = vpack.c.b16 %v368, %v367
        %v375 = vpack.c.b16 %v370, %v369
        %v376 = vpack.c.b16 %v372, %v371
        %vm381 = vcmask 523264
        %v383 = vsel %vm381, %v352, 0
        %385 = vmatprep.subr.bf16.mxu0 0
        %386 = vmatpush1.bf16.msra.mxu0 0
        %387 = vmatprep.subr.bf16.mxu0 0
        %388 = vmatpush1.bf16.msra.mxu0 0
        %389 = vmatprep.subr.bf16.mxu0 0
        %390 = vmatpush1.bf16.msra.mxu0 0
        %391 = vmatprep.subr.bf16.mxu0 0
        %392 = vmatpush1.bf16.msra.mxu0 0
        %393 = vmatprep.subr.bf16.mxu0 0
        %394 = vmatpush1.bf16.msra.mxu0 %v376
        %395 = vmatprep.subr.bf16.mxu0 0
        %396 = vmatpush1.bf16.msra.mxu0 %v375
        %397 = vmatprep.subr.bf16.mxu0 0
        %398 = vmatpush1.bf16.msra.mxu0 %v374
        %399 = vmatprep.subr.bf16.mxu0 0
        %400 = vmatpush1.bf16.msra.mxu0 %v373
        %401 = vmatprep.subr.bf16.mxu0 0
        %402 = vmatpush2.bf16.msra.mxu0 0
        %403 = vmatprep.subr.bf16.mxu0 0
        %404 = vmatpush2.bf16.msra.mxu0 0
        %405 = vmatprep.subr.bf16.mxu0 0
        %406 = vmatpush2.bf16.msra.mxu0 0
        %407 = vmatprep.subr.bf16.mxu0 0
        %408 = vmatpush2.bf16.msra.mxu0 0
        %409 = vmatprep.subr.bf16.mxu0 0
        %410 = vmatpush2.bf16.msra.mxu0 0
        %411 = vmatprep.subr.bf16.mxu0 0
        %412 = vmatpush2.bf16.msra.mxu0 0
        %413 = vmatprep.subr.bf16.mxu0 0
        %414 = vmatpush2.bf16.msra.mxu0 0
        %415 = vmatprep.subr.bf16.mxu0 0
        %416 = vmatpush2.bf16.msra.mxu0 0
        %417 = vmatprep.mubr.bf16.mxu0 0
        %418 = vmatmul.mubr.bf16.gmra.mxu0 %v383
        %v419 = vpop.f32.mrf.mxu0
        %v420 = vadd.f32 %v356, %v419
        %v421 = vpop.f32.mrf.mxu0
        %v422 = vpop.f32.mrf.mxu0
        %v423 = vadd.f32 %v356, %v422
        %v424 = vpop.f32.mrf.mxu0
        %425 = vdwg.mxu0
        %v426 = vtanh.pop %v420
        %v427 = vtanh.pop %v423
        %v428 = vadd.f32 %v336, %v426
        %v429 = vadd.f32 %v339, %v427
        %s430 = scalar_lea.vmem %s3, 32
        %v431 = vld [vmem:[%s430] sm:$0xf]
        %v432 = vld [vmem:[%s430 + $0x4] sm:$0xf]
        %v433 = vld [vmem:[%s430 + $0x8] sm:$0xf]
        %v434 = vld [vmem:[%s430 + $0xc] sm:$0xf]
        %v435 = vld [vmem:[%s430 + $0x10] sm:$0xf]
        %v436 = vld [vmem:[%s430 + $0x14] sm:$0xf]
        %v437 = vld [vmem:[%s430 + $0x18] sm:$0xf]
        %v438 = vld [vmem:[%s430 + $0x1c] sm:$0xf]
        %v439 = vpack.c.bf16 %v429, %v428
        %v440 = vlaneseq
        %v441 = vshrl.u32 %v440, 7
        %v442 = vsub.s32 2, %v441
        %v443 = vrot.slane %v284, %v442
        %v452 = vunpack.c.l.b16 %v431
        %v453 = vunpack.c.l.b16 %v432
        %v454 = vunpack.c.l.b16 %v433
        %v455 = vunpack.c.l.b16 %v434
        %v456 = vunpack.c.l.b16 %v435
        %v457 = vunpack.c.l.b16 %v436
        %v458 = vunpack.c.l.b16 %v437
        %v459 = vunpack.c.l.b16 %v438
        %v460 = vpack.c.b16 %v453, %v452
        %v461 = vpack.c.b16 %v455, %v454
        %v462 = vpack.c.b16 %v457, %v456
        %v463 = vpack.c.b16 %v459, %v458
        %v469 = vsel %vm381, %v439, 0
        %471 = vmatprep.subr.bf16.mxu0 0
        %472 = vmatpush1.bf16.msra.mxu0 0
        %473 = vmatprep.subr.bf16.mxu0 0
        %474 = vmatpush1.bf16.msra.mxu0 0
        %475 = vmatprep.subr.bf16.mxu0 0
        %476 = vmatpush1.bf16.msra.mxu0 0
        %477 = vmatprep.subr.bf16.mxu0 0
        %478 = vmatpush1.bf16.msra.mxu0 0
        %479 = vmatprep.subr.bf16.mxu0 0
        %480 = vmatpush1.bf16.msra.mxu0 %v463
        %481 = vmatprep.subr.bf16.mxu0 0
        %482 = vmatpush1.bf16.msra.mxu0 %v462
        %483 = vmatprep.subr.bf16.mxu0 0
        %484 = vmatpush1.bf16.msra.mxu0 %v461
        %485 = vmatprep.subr.bf16.mxu0 0
        %486 = vmatpush1.bf16.msra.mxu0 %v460
        %487 = vmatprep.subr.bf16.mxu0 0
        %488 = vmatpush2.bf16.msra.mxu0 0
        %489 = vmatprep.subr.bf16.mxu0 0
        %490 = vmatpush2.bf16.msra.mxu0 0
        %491 = vmatprep.subr.bf16.mxu0 0
        %492 = vmatpush2.bf16.msra.mxu0 0
        %493 = vmatprep.subr.bf16.mxu0 0
        %494 = vmatpush2.bf16.msra.mxu0 0
        %495 = vmatprep.subr.bf16.mxu0 0
        %496 = vmatpush2.bf16.msra.mxu0 0
        %497 = vmatprep.subr.bf16.mxu0 0
        %498 = vmatpush2.bf16.msra.mxu0 0
        %499 = vmatprep.subr.bf16.mxu0 0
        %500 = vmatpush2.bf16.msra.mxu0 0
        %501 = vmatprep.subr.bf16.mxu0 0
        %502 = vmatpush2.bf16.msra.mxu0 0
        %503 = vmatprep.mubr.bf16.mxu0 0
        %504 = vmatmul.mubr.bf16.gmra.mxu0 %v469
        %v505 = vpop.f32.mrf.mxu0
        %v506 = vadd.f32 %v443, %v505
        %v507 = vpop.f32.mrf.mxu0
        %v508 = vpop.f32.mrf.mxu0
        %v509 = vadd.f32 %v443, %v508
        %v510 = vpop.f32.mrf.mxu0
        %511 = vdwg.mxu0
        %v512 = vtanh.pop %v506
        %v513 = vtanh.pop %v509
        %v514 = vadd.f32 %v428, %v512
        %v515 = vadd.f32 %v429, %v513
        %v516 = vld [vmem:[%s279] sm:$0xff]
        %v517 = vld [vmem:[%s279 + $0x8] sm:$0xff]
        %vm518 = vcmp.eq.f32.partialorder %v516, 0.0
        %vm519 = vcmp.eq.f32.partialorder %v517, 0.0
        %v520 = vsel %vm518, 0.0, 1.0
        %v521 = vsel %vm519, 0.0, 1.0
        %vm522 = vcmask 523520
        %v523 = vsel %vm522, %v506, -inf
        %v524 = vsel %vm522, %v509, -inf
        %v525 = vmax.f32 %v523, %v524
        %v526 = vrot.slane %v525, 4
        %v527 = vmax.f32 %v525, %v526
        %v528 = vrot.slane %v527, 2
        %v529 = vmax.f32 %v527, %v528
        %v530 = vrot.slane %v529, 1
        %v531 = vmax.f32 %v529, %v530
        %v532 = vsub.f32 %v506, %v531
        %v533 = vsub.f32 %v509, %v531
        %v534 = vmul.f32 %v532, 1.442695
        %v535 = vpow.pop %v534
        %v536 = vmul.f32 %v533, 1.442695
        %v537 = vpow.pop %v536
        %539 = vset.pattern.permute.xlu0 0
        %540 = vperm.xlu0 %539, %v520
        %v541 = vpop.permute.xlu0 %540
        %544 = vset.pattern.permute.xlu0 0
        %545 = vperm.xlu0 %544, %v521
        %v546 = vpop.permute.xlu0 %545
        %v548 = vmul.f32 %v535, %v541
        %v549 = vmul.f32 %v537, %v546
        %552 = vrot.lane.b32.xlu0 %v548, 96
        %v553 = vpop.permute.xlu0 %552
        %554 = vrot.lane.b32.xlu0 %v549, 96
        %v555 = vpop.permute.xlu0 %554
        %v558 = vmul.f32 %v514, %v553
        %v559 = vmul.f32 %v515, %v555
        %vm560 = vcmask 261120
        %v561 = vsel %vm560, %v558, 0.0
        %v562 = vsel %vm560, %v559, 0.0
        %v563 = vadd.f32 %v561, %v562
        %v564 = vrot.slane %v563, 4
        %v565 = vadd.f32 %v563, %v564
        %v566 = vrot.slane %v565, 2
        %v567 = vadd.f32 %v565, %v566
        %v568 = vrot.slane %v567, 1
        %v569 = vadd.f32 %v567, %v568
        %v570 = vsel %vm522, %v548, 0.0
        %v571 = vsel %vm522, %v549, 0.0
        %v572 = vadd.f32 %v570, %v571
        %v573 = vrot.slane %v572, 4
        %v574 = vadd.f32 %v572, %v573
        %v575 = vrot.slane %v574, 2
        %v576 = vadd.f32 %v574, %v575
        %v577 = vrot.slane %v576, 1
        %v578 = vadd.f32 %v576, %v577
        %v579 = vrcp.pop %v578
        %581 = vrot.lane.b32.xlu0 %v579, 96
        %v582 = vpop.permute.xlu0 %581
        %v584 = vmul.f32 %v569, %v582
        %v585 = vld [vmem:[#allocation2] sm:$0xf]
        %v586 = vld [vmem:[#allocation2 + $0x4] sm:$0xf]
        %v587 = vld [vmem:[#allocation2 + $0x8] sm:$0xf]
        %v588 = vld [vmem:[#allocation2 + $0xc] sm:$0xf]
        %v589 = vpack.c.bf16 %v584, %v584
        %v594 = vunpack.c.l.b16 %v585
        %v595 = vunpack.c.l.b16 %v586
        %v596 = vunpack.c.l.b16 %v587
        %v597 = vunpack.c.l.b16 %v588
        %v598 = vpack.c.b16 %v595, %v594
        %v599 = vpack.c.b16 %v597, %v596
        %v603 = vrot.slane %v284, 3
        %v606 = vsel %vm560, %v589, 0
        %608 = vmatprep.subr.bf16.mxu0 0
        %609 = vmatpush1.bf16.msra.mxu0 0
        %610 = vmatprep.subr.bf16.mxu0 0
        %611 = vmatpush1.bf16.msra.mxu0 0
        %612 = vmatprep.subr.bf16.mxu0 0
        %613 = vmatpush1.bf16.msra.mxu0 0
        %614 = vmatprep.subr.bf16.mxu0 0
        %615 = vmatpush1.bf16.msra.mxu0 0
        %616 = vmatprep.subr.bf16.mxu0 0
        %617 = vmatpush1.bf16.msra.mxu0 0
        %618 = vmatprep.subr.bf16.mxu0 0
        %619 = vmatpush1.bf16.msra.mxu0 0
        %620 = vmatprep.subr.bf16.mxu0 0
        %621 = vmatpush1.bf16.msra.mxu0 %v599
        %622 = vmatprep.subr.bf16.mxu0 0
        %623 = vmatpush1.bf16.msra.mxu0 %v598
        %624 = vmatprep.subr.bf16.mxu0 0
        %625 = vmatpush2.bf16.msra.mxu0 0
        %626 = vmatprep.subr.bf16.mxu0 0
        %627 = vmatpush2.bf16.msra.mxu0 0
        %628 = vmatprep.subr.bf16.mxu0 0
        %629 = vmatpush2.bf16.msra.mxu0 0
        %630 = vmatprep.subr.bf16.mxu0 0
        %631 = vmatpush2.bf16.msra.mxu0 0
        %632 = vmatprep.subr.bf16.mxu0 0
        %633 = vmatpush2.bf16.msra.mxu0 0
        %634 = vmatprep.subr.bf16.mxu0 0
        %635 = vmatpush2.bf16.msra.mxu0 0
        %636 = vmatprep.subr.bf16.mxu0 0
        %637 = vmatpush2.bf16.msra.mxu0 0
        %638 = vmatprep.subr.bf16.mxu0 0
        %639 = vmatpush2.bf16.msra.mxu0 0
        %640 = vmatprep.mubr.bf16.mxu0 0
        %641 = vmatmul.mubr.bf16.gmra.mxu0 %v606
        %v642 = vpop.f32.mrf.mxu0
        %v643 = vadd.f32 %v603, %v642
        %v644 = vpop.f32.mrf.mxu0
        %v645 = vpop.f32.mrf.mxu0
        %v646 = vpop.f32.mrf.mxu0
        %647 = vdwg.mxu0
        %v648 = vtanh.pop %v643
        %v649 = vadd.f32 %v584, %v648
        %s650 = scalar_lea.vmem [#allocation2], 16
        %v651 = vld [vmem:[%s650] sm:$0xf]
        %v652 = vld [vmem:[%s650 + $0x4] sm:$0xf]
        %v653 = vld [vmem:[%s650 + $0x8] sm:$0xf]
        %v654 = vld [vmem:[%s650 + $0xc] sm:$0xf]
        %v655 = vpack.c.bf16 %v649, %v649
        %v660 = vunpack.c.l.b16 %v651
        %v661 = vunpack.c.l.b16 %v652
        %v662 = vunpack.c.l.b16 %v653
        %v663 = vunpack.c.l.b16 %v654
        %v664 = vpack.c.b16 %v661, %v660
        %v665 = vpack.c.b16 %v663, %v662
        %v668 = vrot.slane %v284, 4
        %v671 = vsel %vm560, %v655, 0
        %673 = vmatprep.subr.bf16.mxu0 0
        %674 = vmatpush1.bf16.msra.mxu0 0
        %675 = vmatprep.subr.bf16.mxu0 0
        %676 = vmatpush1.bf16.msra.mxu0 0
        %677 = vmatprep.subr.bf16.mxu0 0
        %678 = vmatpush1.bf16.msra.mxu0 0
        %679 = vmatprep.subr.bf16.mxu0 0
        %680 = vmatpush1.bf16.msra.mxu0 0
        %681 = vmatprep.subr.bf16.mxu0 0
        %682 = vmatpush1.bf16.msra.mxu0 0
        %683 = vmatprep.subr.bf16.mxu0 0
        %684 = vmatpush1.bf16.msra.mxu0 0
        %685 = vmatprep.subr.bf16.mxu0 0
        %686 = vmatpush1.bf16.msra.mxu0 %v665
        %687 = vmatprep.subr.bf16.mxu0 0
        %688 = vmatpush1.bf16.msra.mxu0 %v664
        %689 = vmatprep.subr.bf16.mxu0 0
        %690 = vmatpush2.bf16.msra.mxu0 0
        %691 = vmatprep.subr.bf16.mxu0 0
        %692 = vmatpush2.bf16.msra.mxu0 0
        %693 = vmatprep.subr.bf16.mxu0 0
        %694 = vmatpush2.bf16.msra.mxu0 0
        %695 = vmatprep.subr.bf16.mxu0 0
        %696 = vmatpush2.bf16.msra.mxu0 0
        %697 = vmatprep.subr.bf16.mxu0 0
        %698 = vmatpush2.bf16.msra.mxu0 0
        %699 = vmatprep.subr.bf16.mxu0 0
        %700 = vmatpush2.bf16.msra.mxu0 0
        %701 = vmatprep.subr.bf16.mxu0 0
        %702 = vmatpush2.bf16.msra.mxu0 0
        %703 = vmatprep.subr.bf16.mxu0 0
        %704 = vmatpush2.bf16.msra.mxu0 0
        %705 = vmatprep.mubr.bf16.mxu0 0
        %706 = vmatmul.mubr.bf16.gmra.mxu0 %v671
        %v707 = vpop.f32.mrf.mxu0
        %v708 = vadd.f32 %v668, %v707
        %v709 = vpop.f32.mrf.mxu0
        %v710 = vpop.f32.mrf.mxu0
        %v711 = vpop.f32.mrf.mxu0
        %712 = vdwg.mxu0
        %v713 = vtanh.pop %v708
        %v714 = vadd.f32 %v649, %v713
        %s715 = scalar_lea.vmem [#allocation2], 32
        %v716 = vld [vmem:[%s715] sm:$0xf]
        %v717 = vld [vmem:[%s715 + $0x4] sm:$0xf]
        %v718 = vld [vmem:[%s715 + $0x8] sm:$0xf]
        %v719 = vld [vmem:[%s715 + $0xc] sm:$0xf]
        %v720 = vpack.c.bf16 %v714, %v714
        %v725 = vunpack.c.l.b16 %v716
        %v726 = vunpack.c.l.b16 %v717
        %v727 = vunpack.c.l.b16 %v718
        %v728 = vunpack.c.l.b16 %v719
        %v729 = vpack.c.b16 %v726, %v725
        %v730 = vpack.c.b16 %v728, %v727
        %v733 = vrot.slane %v284, 5
        %v736 = vsel %vm560, %v720, 0
        %738 = vmatprep.subr.bf16.mxu0 0
        %739 = vmatpush1.bf16.msra.mxu0 0
        %740 = vmatprep.subr.bf16.mxu0 0
        %741 = vmatpush1.bf16.msra.mxu0 0
        %742 = vmatprep.subr.bf16.mxu0 0
        %743 = vmatpush1.bf16.msra.mxu0 0
        %744 = vmatprep.subr.bf16.mxu0 0
        %745 = vmatpush1.bf16.msra.mxu0 0
        %746 = vmatprep.subr.bf16.mxu0 0
        %747 = vmatpush1.bf16.msra.mxu0 0
        %748 = vmatprep.subr.bf16.mxu0 0
        %749 = vmatpush1.bf16.msra.mxu0 0
        %750 = vmatprep.subr.bf16.mxu0 0
        %751 = vmatpush1.bf16.msra.mxu0 %v730
        %752 = vmatprep.subr.bf16.mxu0 0
        %753 = vmatpush1.bf16.msra.mxu0 %v729
        %754 = vmatprep.subr.bf16.mxu0 0
        %755 = vmatpush2.bf16.msra.mxu0 0
        %756 = vmatprep.subr.bf16.mxu0 0
        %757 = vmatpush2.bf16.msra.mxu0 0
        %758 = vmatprep.subr.bf16.mxu0 0
        %759 = vmatpush2.bf16.msra.mxu0 0
        %760 = vmatprep.subr.bf16.mxu0 0
        %761 = vmatpush2.bf16.msra.mxu0 0
        %762 = vmatprep.subr.bf16.mxu0 0
        %763 = vmatpush2.bf16.msra.mxu0 0
        %764 = vmatprep.subr.bf16.mxu0 0
        %765 = vmatpush2.bf16.msra.mxu0 0
        %766 = vmatprep.subr.bf16.mxu0 0
        %767 = vmatpush2.bf16.msra.mxu0 0
        %768 = vmatprep.subr.bf16.mxu0 0
        %769 = vmatpush2.bf16.msra.mxu0 0
        %770 = vmatprep.mubr.bf16.mxu0 0
        %771 = vmatmul.mubr.bf16.gmra.mxu0 %v736
        %v772 = vpop.f32.mrf.mxu0
        %v773 = vadd.f32 %v733, %v772
        %v774 = vpop.f32.mrf.mxu0
        %v775 = vpop.f32.mrf.mxu0
        %v776 = vpop.f32.mrf.mxu0
        %777 = vdwg.mxu0
        %v778 = vtanh.pop %v773
        %v779 = vadd.f32 %v714, %v778
        %v780 = vpack.c.bf16 %v284, %v284
        %v781 = vpack.c.bf16 %v779, %v779
        %v782 = vunpack.c.l.bf16 %v780
        %v783 = vunpack.c.l.bf16 %v781
        %v785 = vrot.slane %v783, 2
        %v787 = vmul.f32 %v782, %v785
        %vm788 = vcmask 260102
        %v789 = vsel %vm788, %v787, 0.0
        %790 = vadd.xlane.f32.xlu0 %v789
        %v791 = vpop.xlane.xlu0 %790
        %v792 = vrot.slane %v284, 1
        %v794 = vadd.f32 %v791, %v792
        %vm795 = vcmask 6150
        %796 = vst.msk [vmem:[%s282 - $0x6] sm:$0x40] %vm795, %v794
        %p797 = scmp.lt.s32.totalorder %s18, 1
        %s798 = scalar_select %p797, %s18, 1
        %s799 = scalar_lea.vmem %s6, %s798
        // Predicated region
        $region49: #{tpu_custom_call.1} parent=43 // pred_check
          %p800 = pneg %p172
        $region50: #{tpu_custom_call.1} parent=43 // pred_check_branch
          %802 = sbr.rel (%p800) target = $region52
        $region51: #{tpu_custom_call.1} parent=43 // pred_region
          _
        $region52: #{tpu_custom_call.1} parent=43 // pred_fallthru
          _
      $region44: #{tpu_custom_call.1} parent=5 // pred_fallthru
        _
      %p803 = scmp.le.s32.totalorder 2, %s13
      // Predicated region
      $region53: #{tpu_custom_call.1} parent=5 // pred_check
        %p804 = pneg %p803
      $region54: #{tpu_custom_call.1} parent=5 // pred_check_branch
        %806 = sbr.rel (%p804) target = $region56
      $region55: #{tpu_custom_call.1} parent=5 // pred_region
        %s807 = ssub.s32 %s13, 2
        // Predicated region
        $region57: #{tpu_custom_call.1} parent=55 // pred_check
          %p808 = pneg %p178
        $region58: #{tpu_custom_call.1} parent=55 // pred_check_branch
          %810 = sbr.rel (%p808) target = $region60
        $region59: #{tpu_custom_call.1} parent=55 // pred_region
          %p811 = scmp.lt.s32.totalorder %s19, 1
          %s812 = scalar_select %p811, %s19, 1
          %s813 = scalar_lea.vmem %s6, %s812
        $region60: #{tpu_custom_call.1} parent=55 // pred_fallthru
          _
      $region56: #{tpu_custom_call.1} parent=5 // pred_fallthru
        _
    $region6: #{tpu_custom_call.1} parent=1 // loop_footer
      %s17 = sadd.s32 1, %s13
    $region7: #{tpu_custom_call.1} parent=1 // loop_footer_branch
      %12 = sbr.rel target = $region3
    $region8: #{tpu_custom_call.1} parent=1 // loop_exit
      _
    %814 = vsyncpa [#allocation3], 1
    %s815 = scalar_lea.sflag [#allocation3], 1
    %816 = vsyncpa %s815, 1

</llo_original>
